<compile_context>
chip_gen: v6e
topology: v6e:2x2x1
jax: 0.10.0
libtpu: 0.0.40
codegen_flags: <defaults>
</compile_context>

<pallas_src>
import math
import jax
import jax.numpy as jnp
from jax.experimental import pallas as pl
from jax.experimental.pallas import tpu as pltpu

NEG_SLOPE = 0.01   # nn.LeakyReLU() default negative_slope
LANE = 128
SUBLANE = 8


def _round_up(v, m):
    return (v + m - 1) // m * m


def _cdiv(a, b):
    return -(-a // b)


def _leaky_relu(x):
    # max(x, 0.01*x): mul+max instead of cmp+mul+select.
    return jnp.maximum(x, NEG_SLOPE * x)


def _vmem_capacity_bytes():
    try:
        cap = getattr(pltpu.get_tpu_info(), "vmem_capacity_bytes", None)
        if cap:
            return int(cap)
    except Exception:
        pass
    return 64 * 1024 * 1024   # conservative default: v7x per-TensorCore VMEM


# ----------------------------------- kernel -----------------------------------

def expr_head_kernel(x_ref, w1_ref, b1_ref, w2_ref, b2_ref, w3_ref, b3_ref,
                     out_ref, h2_ref):
    # Grid = (row tiles, output-column tiles).  Layers 1-2 only depend on the row
    # tile, so compute them once per row tile (col == 0) into a bf16 VMEM scratch.
    @pl.when(pl.program_id(1) == 0)
    def _():
        x = x_ref[...].astype(jnp.bfloat16)
        h1 = jnp.dot(x, w1_ref[...], preferred_element_type=jnp.float32) + b1_ref[...]
        h1 = _leaky_relu(h1).astype(jnp.bfloat16)
        h2 = jnp.dot(h1, w2_ref[...], preferred_element_type=jnp.float32) + b2_ref[...]
        h2_ref[...] = _leaky_relu(h2).astype(jnp.bfloat16)

    y = jnp.dot(h2_ref[...], w3_ref[...], preferred_element_type=jnp.float32) + b3_ref[...]
    out_ref[...] = y.astype(out_ref.dtype)


# ------------------------------ param preparation ------------------------------

def prepare_expr_head_params(params):
    """One-time: pad weights/biases to lane-dense (multiple-of-128) shapes, weights bf16.

    Zero padding is exact: padded x columns hit zero weight rows, padded hidden
    columns are LeakyReLU(0 + 0) = 0, and padded output columns are sliced off.
    """
    D = params["w1"].shape[0]
    P = params["w3"].shape[1]
    Dp, Pp = _round_up(D, LANE), _round_up(P, LANE)

    def pad_w(w, rows, cols):
        out = jnp.zeros((rows, cols), jnp.bfloat16)
        return out.at[: w.shape[0], : w.shape[1]].set(w.astype(jnp.bfloat16))

    def pad_b(b, cols):
        out = jnp.zeros((1, cols), jnp.float32)
        return out.at[0, : b.shape[0]].set(b.astype(jnp.float32))

    return {
        "w1": pad_w(params["w1"], Dp, Dp), "b1": pad_b(params["b1"], Dp),
        "w2": pad_w(params["w2"], Dp, Dp), "b2": pad_b(params["b2"], Dp),
        "w3": pad_w(params["w3"], Dp, Pp), "b3": pad_b(params["b3"], Pp),
        "d_model": D, "peak_length": P,
    }


# ------------------------------- tiling heuristics -------------------------------

def _choose_tiling(M, Dp, Pp, x_itemsize, out_itemsize, tile_m_cap):
    """Generation-aware tile sizing from a VMEM budget."""
    cap = _vmem_capacity_bytes()
    # ~7/8 of physical VMEM, capped at 112 MiB (v5e/v6e); -> ~56 MiB on v7x.
    vmem_limit = min(cap * 7 // 8, 112 * 1024 * 1024)
    budget = int(vmem_limit * 0.85)          # headroom for compiler temporaries

    def weight_bytes(tn, w3_bufs):
        return (2 * Dp * Dp * 2              # w1, w2 bf16, single-buffered
                + Dp * tn * 2 * w3_bufs      # w3 column tile (bf16)
                + 2 * Dp * 4                 # b1, b2 (f32)
                + tn * 4 * w3_bufs)          # b3 column tile (f32)

    def per_row_bytes(tn):
        return (2 * Dp * x_itemsize          # x tile, double-buffered
                + 2 * tn * out_itemsize      # out tile, double-buffered
                + Dp * 2                     # h2 bf16 scratch
                + 2 * Dp * (4 + 2)           # f32 h1/h2 temps + their bf16 casts
                + tn * (4 + 2))              # f32 y temp + bf16 cast

    # Widest output-column tile (divisor of Pp, multiple of 128) that fits the budget
    # with at least a minimal row tile.  nt == 1 keeps w3 fully resident
    # (single-buffered); nt > 1 streams w3 column tiles (double-buffered).
    min_tm = min(_round_up(M, SUBLANE), 256)
    n_lanes = Pp // LANE
    tn, w3_bufs = LANE, 2
    for nt in range(1, n_lanes + 1):
        if n_lanes % nt:
            continue
        cand = Pp // nt
        bufs = 1 if nt == 1 else 2
        if weight_bytes(cand, bufs) + per_row_bytes(cand) * min_tm <= budget:
            tn, w3_bufs = cand, bufs
            break
    # TODO(synk): for very large d_model (w1/w2 alone exceed the VMEM budget) a
    # K-tiled variant of layers 1-2 would be required; not implemented here.

    # Largest row tile from the remaining budget.
    avail = budget - weight_bytes(tn, w3_bufs)
    tm_max = max(SUBLANE, avail // max(per_row_bytes(tn), 1))
    tm_max = min(tm_max, tile_m_cap, _round_up(M, SUBLANE))
    tm_max = max(SUBLANE, tm_max // SUBLANE * SUBLANE)

    # Balanced row tiles (minimal padding); keep an even tile count >= 2 so the
    # "parallel" M axis shards cleanly across v7x's two TensorCores.
    n_row_tiles = _cdiv(M, tm_max)
    if n_row_tiles == 1 and M >= 2 * SUBLANE:
        n_row_tiles = 2
    if n_row_tiles > 1 and n_row_tiles % 2 == 1:
        n_row_tiles += 1
    tm = _round_up(_cdiv(M, n_row_tiles), SUBLANE)
    Mp = tm * n_row_tiles
    return tm, n_row_tiles, Mp, tn, Pp // tn, w3_bufs, int(vmem_limit)


# ----------------------------------- wrapper -----------------------------------

def expr_head_forward(x, prepared, *, tile_m=None, out_dtype=jnp.bfloat16):
    """x: (B, S, d_model) -> (B, S, peak_length), returned in x.dtype."""
    B, S, D = x.shape
    assert D == prepared["d_model"], (D, prepared["d_model"])
    Dp = prepared["w1"].shape[0]
    Pp = prepared["w3"].shape[1]
    P = prepared["peak_length"]
    M = B * S

    if tile_m is None:
        # Small feature dims are DMA/step-overhead bound: allow bigger row tiles.
        tile_m = 2048 if Dp <= 256 else 1024

    x2d = x.reshape(M, D)
    out_itemsize = jnp.dtype(out_dtype).itemsize
    needs_feat_pad = (D != Dp)
    # If we must pad, the padded copy is written in bf16 (half the bytes); otherwise
    # x is passed through untouched and cast to bf16 in-kernel (no wrapper pass).
    x_itemsize = 2 if needs_feat_pad else x2d.dtype.itemsize

    tm, n_row_tiles, Mp, tn, n_col_tiles, _w3_bufs, vmem_limit = _choose_tiling(
        M, Dp, Pp, x_itemsize, out_itemsize, tile_m)

    if needs_feat_pad or Mp != M:
        x2d = jnp.pad(x2d.astype(jnp.bfloat16), ((0, Mp - M), (0, Dp - D)))

    grid = (n_row_tiles, n_col_tiles)
    resident = pl.Buffered(1)                                   # constant-index weights
    w3_mode = pl.Buffered(1) if n_col_tiles == 1 else pl.Buffered(2)

    flops = 2 * Mp * Dp * (2 * Dp + Pp)
    bytes_accessed = (
        Mp * Dp * x_itemsize + Mp * Pp * out_itemsize           # activations in / out
        + 2 * Dp * Dp * 2 + Dp * Pp * 2                         # bf16 weights
        + (2 * Dp + Pp) * 4)                                    # f32 biases

    out2d = pl.pallas_call(
        expr_head_kernel,
        out_shape=jax.ShapeDtypeStruct((Mp, Pp), out_dtype),
        grid_spec=pltpu.PrefetchScalarGridSpec(
            num_scalar_prefetch=0,
            grid=grid,
            in_specs=[
                pl.BlockSpec((tm, Dp), lambda i, j: (i, 0)),                          # x rows
                pl.BlockSpec((Dp, Dp), lambda i, j: (0, 0), pipeline_mode=resident),  # w1
                pl.BlockSpec((1, Dp), lambda i, j: (0, 0), pipeline_mode=resident),   # b1
                pl.BlockSpec((Dp, Dp), lambda i, j: (0, 0), pipeline_mode=resident),  # w2
                pl.BlockSpec((1, Dp), lambda i, j: (0, 0), pipeline_mode=resident),   # b2
                pl.BlockSpec((Dp, tn), lambda i, j: (0, j), pipeline_mode=w3_mode),   # w3
                pl.BlockSpec((1, tn), lambda i, j: (0, j), pipeline_mode=w3_mode),    # b3
            ],
            out_specs=pl.BlockSpec((tm, tn), lambda i, j: (i, j)),
            scratch_shapes=[pltpu.VMEM((tm, Dp), jnp.bfloat16)],  # h2 kept per row tile
        ),
        compiler_params=pltpu.CompilerParams(
            dimension_semantics=("parallel", "arbitrary"),
            vmem_limit_bytes=vmem_limit,
        ),
        cost_estimate=pl.CostEstimate(
            flops=flops, transcendentals=0, bytes_accessed=bytes_accessed),
    )(x2d, prepared["w1"], prepared["b1"], prepared["w2"], prepared["b2"],
      prepared["w3"], prepared["b3"])

    return out2d[:M, :P].reshape(B, S, P).astype(x.dtype)


# ----------------------------- init (matches PyTorch) -----------------------------

def _xavier_uniform(key, fan_in, fan_out, gain):
    # matches torch.nn.init.xavier_uniform_ on a (out, in) weight; emitted as (in, out)
    limit = gain * math.sqrt(6.0 / (fan_in + fan_out))
    return jax.random.uniform(key, (fan_in, fan_out), jnp.float32, -limit, limit)


def _linear_bias(key, fan_in, fan_out):
    # torch default nn.Linear bias init: U(-1/sqrt(fan_in), 1/sqrt(fan_in))
    bound = 1.0 / math.sqrt(fan_in)
    return jax.random.uniform(key, (fan_out,), jnp.float32, -bound, bound)


def init_expr_head_params(key, d_model, peak_length):
    ks = jax.random.split(key, 6)
    gain = 1.0 / math.sqrt(2.0)
    return {
        "w1": _xavier_uniform(ks[0], d_model, d_model, gain),
        "b1": _linear_bias(ks[1], d_model, d_model),
        "w2": _xavier_uniform(ks[2], d_model, d_model, gain),
        "b2": _linear_bias(ks[3], d_model, d_model),
        "w3": _xavier_uniform(ks[4], d_model, peak_length, gain),
        "b3": _linear_bias(ks[5], d_model, peak_length),
    }


if __name__ == "__main__":
    B, S, D, P = 2, 8, 32, 16   # batch, seq_len, d_model, peak_length

    key = jax.random.PRNGKey(0)
    k_x, k_p = jax.random.split(key)
    x = jax.random.normal(k_x, (B, S, D), jnp.float32)
    params = init_expr_head_params(k_p, D, P)

    prepared = prepare_expr_head_params(params)
    out = expr_head_forward(x, prepared)
    out = jax.block_until_ready(out)

    # Pure-JAX reference mirroring the kernel's bf16-operand / f32-accumulate path.
    def ref(x, p):
        def lrelu(v):
            return jnp.maximum(v, NEG_SLOPE * v)
        h = lrelu(jnp.dot(x.astype(jnp.bfloat16), p["w1"].astype(jnp.bfloat16),
                          preferred_element_type=jnp.float32) + p["b1"])
        h = lrelu(jnp.dot(h.astype(jnp.bfloat16), p["w2"].astype(jnp.bfloat16),
                          preferred_element_type=jnp.float32) + p["b2"])
        return jnp.dot(h.astype(jnp.bfloat16), p["w3"].astype(jnp.bfloat16),
                       preferred_element_type=jnp.float32) + p["b3"]

    expected = ref(x, params)
    assert out.shape == (B, S, P), out.shape
    max_err = float(jnp.max(jnp.abs(out - expected)))
    assert jnp.allclose(out, expected, atol=2.5e-2, rtol=2.5e-2), max_err

    print("KERNEL_OK")
</pallas_src>

<mosaic_0001>
module attributes {stable_mosaic.version = 11 : i64} {
  func.func @expr_head_kernel(%arg0: i32, %arg1: i32, %arg2: memref<8x128xbf16, #tpu.memory_space<vmem>>, %arg3: memref<128x128xbf16, #tpu.memory_space<vmem>>, %arg4: memref<1x128xf32, #tpu.memory_space<vmem>>, %arg5: memref<128x128xbf16, #tpu.memory_space<vmem>>, %arg6: memref<1x128xf32, #tpu.memory_space<vmem>>, %arg7: memref<128x128xbf16, #tpu.memory_space<vmem>>, %arg8: memref<1x128xf32, #tpu.memory_space<vmem>>, %arg9: memref<8x128xbf16, #tpu.memory_space<vmem>>, %arg10: memref<8x128xbf16, #tpu.memory_space<vmem>>) attributes {dimension_semantics = [#tpu.dimension_semantics<parallel>, #tpu.dimension_semantics<arbitrary>], iteration_bounds = array<i64: 2, 1>, scalar_prefetch = 0 : i64, scratch_operands = 1 : i64, tpu.core_type = #tpu.core_type<tc>, window_params = [{transform_indices = @transform_0, window_bounds = array<i64: 8, 128>}, {pipeline_mode = #tpu.pipeline_mode<synchronous>, transform_indices = @transform_1, window_bounds = array<i64: 128, 128>}, {pipeline_mode = #tpu.pipeline_mode<synchronous>, transform_indices = @transform_2, window_bounds = array<i64: 1, 128>}, {pipeline_mode = #tpu.pipeline_mode<synchronous>, transform_indices = @transform_3, window_bounds = array<i64: 128, 128>}, {pipeline_mode = #tpu.pipeline_mode<synchronous>, transform_indices = @transform_4, window_bounds = array<i64: 1, 128>}, {pipeline_mode = #tpu.pipeline_mode<synchronous>, transform_indices = @transform_5, window_bounds = array<i64: 128, 128>}, {pipeline_mode = #tpu.pipeline_mode<synchronous>, transform_indices = @transform_6, window_bounds = array<i64: 1, 128>}, {transform_indices = @transform_7, window_bounds = array<i64: 8, 128>}]} {
    %c0_i32 = arith.constant 0 : i32
    %0 = arith.cmpi eq, %arg1, %c0_i32 : i32
    %1 = arith.extui %0 : i1 to i32
    %c0_i32_0 = arith.constant 0 : i32
    %2 = arith.cmpi ne, %1, %c0_i32_0 : i32
    scf.if %2 {
      %c0_8 = arith.constant 0 : index
      %c0_9 = arith.constant 0 : index
      %11 = vector.load %arg2[%c0_8, %c0_9] : memref<8x128xbf16, #tpu.memory_space<vmem>>, vector<8x128xbf16>
      %c0_10 = arith.constant 0 : index
      %c0_11 = arith.constant 0 : index
      %12 = vector.load %arg3[%c0_10, %c0_11] : memref<128x128xbf16, #tpu.memory_space<vmem>>, vector<128x128xbf16>
      %cst_12 = arith.constant dense<0.000000e+00> : vector<8x128xf32>
      %13 = tpu.matmul %11, %12, %cst_12 {dimension_numbers = #tpu.dot_dimension_numbers<[1], [0], [0], [1], [0, 0, 1, 1], [], []>} : vector<8x128xbf16>, vector<128x128xbf16>, vector<8x128xf32> -> vector<8x128xf32>
      %c0_13 = arith.constant 0 : index
      %c0_14 = arith.constant 0 : index
      %14 = vector.load %arg4[%c0_13, %c0_14] : memref<1x128xf32, #tpu.memory_space<vmem>>, vector<1x128xf32>
      %15 = vector.broadcast %14 : vector<1x128xf32> to vector<8x128xf32>
      %16 = arith.addf %13, %15 : vector<8x128xf32>
      %cst_15 = arith.constant 0.00999999977 : f32
      %17 = vector.broadcast %cst_15 : f32 to vector<8x128xf32>
      %18 = arith.mulf %17, %16 : vector<8x128xf32>
      %19 = arith.maximumf %16, %18 : vector<8x128xf32>
      %20 = arith.truncf %19 : vector<8x128xf32> to vector<8x128xbf16>
      %c0_16 = arith.constant 0 : index
      %c0_17 = arith.constant 0 : index
      %21 = vector.load %arg5[%c0_16, %c0_17] : memref<128x128xbf16, #tpu.memory_space<vmem>>, vector<128x128xbf16>
      %cst_18 = arith.constant dense<0.000000e+00> : vector<8x128xf32>
      %22 = tpu.matmul %20, %21, %cst_18 {dimension_numbers = #tpu.dot_dimension_numbers<[1], [0], [0], [1], [0, 0, 1, 1], [], []>} : vector<8x128xbf16>, vector<128x128xbf16>, vector<8x128xf32> -> vector<8x128xf32>
      %c0_19 = arith.constant 0 : index
      %c0_20 = arith.constant 0 : index
      %23 = vector.load %arg6[%c0_19, %c0_20] : memref<1x128xf32, #tpu.memory_space<vmem>>, vector<1x128xf32>
      %24 = vector.broadcast %23 : vector<1x128xf32> to vector<8x128xf32>
      %25 = arith.addf %22, %24 : vector<8x128xf32>
      %cst_21 = arith.constant 0.00999999977 : f32
      %26 = vector.broadcast %cst_21 : f32 to vector<8x128xf32>
      %27 = arith.mulf %26, %25 : vector<8x128xf32>
      %28 = arith.maximumf %25, %27 : vector<8x128xf32>
      %29 = arith.truncf %28 : vector<8x128xf32> to vector<8x128xbf16>
      %c0_22 = arith.constant 0 : index
      %c0_23 = arith.constant 0 : index
      %30 = vector.load %arg10[%c0_22, %c0_23] : memref<8x128xbf16, #tpu.memory_space<vmem>>, vector<8x128xbf16>
      tpu.vector_store %arg10[%c0_22, %c0_23], %29 {strides = array<i32>} : memref<8x128xbf16, #tpu.memory_space<vmem>>, vector<8x128xbf16>,
    } else {
    }
    %c0 = arith.constant 0 : index
    %c0_1 = arith.constant 0 : index
    %3 = vector.load %arg10[%c0, %c0_1] : memref<8x128xbf16, #tpu.memory_space<vmem>>, vector<8x128xbf16>
    %c0_2 = arith.constant 0 : index
    %c0_3 = arith.constant 0 : index
    %4 = vector.load %arg7[%c0_2, %c0_3] : memref<128x128xbf16, #tpu.memory_space<vmem>>, vector<128x128xbf16>
    %cst = arith.constant dense<0.000000e+00> : vector<8x128xf32>
    %5 = tpu.matmul %3, %4, %cst {dimension_numbers = #tpu.dot_dimension_numbers<[1], [0], [0], [1], [0, 0, 1, 1], [], []>} : vector<8x128xbf16>, vector<128x128xbf16>, vector<8x128xf32> -> vector<8x128xf32>
    %c0_4 = arith.constant 0 : index
    %c0_5 = arith.constant 0 : index
    %6 = vector.load %arg8[%c0_4, %c0_5] : memref<1x128xf32, #tpu.memory_space<vmem>>, vector<1x128xf32>
    %7 = vector.broadcast %6 : vector<1x128xf32> to vector<8x128xf32>
    %8 = arith.addf %5, %7 : vector<8x128xf32>
    %9 = arith.truncf %8 : vector<8x128xf32> to vector<8x128xbf16>
    %c0_6 = arith.constant 0 : index
    %c0_7 = arith.constant 0 : index
    %10 = vector.load %arg9[%c0_6, %c0_7] : memref<8x128xbf16, #tpu.memory_space<vmem>>, vector<8x128xbf16>
    tpu.vector_store %arg9[%c0_6, %c0_7], %9 {strides = array<i32>} : memref<8x128xbf16, #tpu.memory_space<vmem>>, vector<8x128xbf16>,
    return
  }
  func.func @transform_0(%arg0: i32, %arg1: i32) -> (i32, i32) {
    %c0_i32 = arith.constant 0 : i32
    %c0_i32_0 = arith.constant 0 : i32
    return %arg0, %c0_i32 : i32, i32
  }
  func.func @transform_1(%arg0: i32, %arg1: i32) -> (i32, i32) {
    %c0_i32 = arith.constant 0 : i32
    %c0_i32_0 = arith.constant 0 : i32
    %c0_i32_1 = arith.constant 0 : i32
    return %c0_i32, %c0_i32_0 : i32, i32
  }
  func.func @transform_2(%arg0: i32, %arg1: i32) -> (i32, i32) {
    %c0_i32 = arith.constant 0 : i32
    %c0_i32_0 = arith.constant 0 : i32
    %c0_i32_1 = arith.constant 0 : i32
    return %c0_i32, %c0_i32_0 : i32, i32
  }
  func.func @transform_3(%arg0: i32, %arg1: i32) -> (i32, i32) {
    %c0_i32 = arith.constant 0 : i32
    %c0_i32_0 = arith.constant 0 : i32
    %c0_i32_1 = arith.constant 0 : i32
    return %c0_i32, %c0_i32_0 : i32, i32
  }
  func.func @transform_4(%arg0: i32, %arg1: i32) -> (i32, i32) {
    %c0_i32 = arith.constant 0 : i32
    %c0_i32_0 = arith.constant 0 : i32
    %c0_i32_1 = arith.constant 0 : i32
    return %c0_i32, %c0_i32_0 : i32, i32
  }
  func.func @transform_5(%arg0: i32, %arg1: i32) -> (i32, i32) {
    %c0_i32 = arith.constant 0 : i32
    %c0_i32_0 = arith.constant 0 : i32
    return %c0_i32, %arg1 : i32, i32
  }
  func.func @transform_6(%arg0: i32, %arg1: i32) -> (i32, i32) {
    %c0_i32 = arith.constant 0 : i32
    %c0_i32_0 = arith.constant 0 : i32
    return %c0_i32, %arg1 : i32, i32
  }
  func.func @transform_7(%arg0: i32, %arg1: i32) -> (i32, i32) {
    %c0_i32 = arith.constant 0 : i32
    return %arg0, %arg1 : i32, i32
  }
}

</mosaic_0001>

<llo_original>
// kernel: tpu_custom_call.1
$region0: #{tpu_custom_call.1}
  #allocation0 [shape = 'u32[]', space=smem, size = 0x4, offset = 0x4, fixed_abs, tag = 'smem constant byte address 0x4 - core index']
  #allocation1 [shape = 'u32[144,128]{1,0:T(1,128)}', space=vmem, size = 0x12000, scoped, tag = 'internal scratch']
  #allocation2 [shape = 'bf16[8,128]{1,0:T(8,128)(2,1)}', space=vmem, size = 0x800, scoped, tag = 'scratch operand']
  %s0 = inlined_call_operand.hbm [shape: bf16[16,128], index: 0, kind: input, shape index: {}]
  %s1 = inlined_call_operand.hbm [shape: bf16[128,128], index: 1, kind: input, shape index: {}]
  %s2 = inlined_call_operand.vmem [shape: f32[1,128], index: 2, kind: input, shape index: {}]
  %s3 = inlined_call_operand.hbm [shape: bf16[128,128], index: 3, kind: input, shape index: {}]
  %s4 = inlined_call_operand.vmem [shape: f32[1,128], index: 4, kind: input, shape index: {}]
  %s5 = inlined_call_operand.hbm [shape: bf16[128,128], index: 5, kind: input, shape index: {}]
  %s6 = inlined_call_operand.vmem [shape: f32[1,128], index: 6, kind: input, shape index: {}]
  %s7 = inlined_call_operand.hbm [shape: bf16[16,128], index: 7, kind: output, shape index: {}]
  %s8 = sld [smem:[#allocation0]]
  $region81: #{tpu_custom_call.1} parent=0
    _
  %s10 = ssub.s32 1, %s8
  %s11 = scalar_select 0, %s10, %s8
  $region1: #{tpu_custom_call.1} parent=0
    #allocation3 [shape = 'u8[4096]{0}', space=vmem, size = 0x1000, scoped, tag = 'input window, operand 0']
    #allocation4 [shape = 's32[2]{0}', space=sflag, size = 0x8, scoped, tag = 'scoped memory for tpu_custom_call.1']
    #allocation5 [shape = 's32[2]{0}', space=sflag, size = 0x8, scoped, tag = 'scoped memory for tpu_custom_call.1']
    #allocation6 [shape = 'u8[32768]{0}', space=vmem, size = 0x8000, scoped, tag = 'input window, operand 1, single buffered']
    #allocation7 [shape = 's32[1]{0}', space=sflag, size = 0x4, scoped, tag = 'scoped memory for tpu_custom_call.1']
    #allocation8 [shape = 'u8[32768]{0}', space=vmem, size = 0x8000, scoped, tag = 'input window, operand 3, single buffered']
    #allocation9 [shape = 'u8[32768]{0}', space=vmem, size = 0x8000, scoped, tag = 'input window, operand 5, single buffered']
    #allocation10 [shape = 's32[1]{0}', space=sflag, size = 0x4, scoped, tag = 'scoped memory for tpu_custom_call.1']
    #allocation11 [shape = 'u8[4096]{0}', space=vmem, size = 0x1000, scoped, tag = 'output window, operand 0']
    %12 = vsyncpa [#allocation4], 0
    %s13 = scalar_lea.sflag [#allocation4], 1
    %14 = vsyncpa %s13, 0
    %15 = vsyncpa [#allocation7], 0
    %16 = vsyncpa [#allocation10], 0
    %17 = vsyncpa [#allocation5], 0
    %s18 = scalar_lea.sflag [#allocation5], 1
    %19 = vsyncpa %s18, 0
    loop: start=0, step=1, limit=4
    $region2: #{tpu_custom_call.1} parent=1 // loop_pre_header
      _
    $region3: #{tpu_custom_call.1} parent=1 // loop_header
      %s21 = sphi 0, %s25
      %p22 = scmp.ge.s32.totalorder %s21, 4
      %s28 = sphi 0, %s40
      %s29 = sphi 0, %s36
      %s30 = sphi 0, %s28
      %s31 = sphi 0, %s29
      %s32 = sphi 0, %s30
      %s33 = sphi 0, %s31
      %s43 = sphi 0, %s45
      %s46 = sphi 0, %s43
      %s47 = sphi 0, %s46
      %s63 = sphi 0, %s47
      %s67 = sphi 0, %s67
      %s69 = sphi 0, %s67
      %s70 = sphi 0, %s69
      %s84 = sphi 0, %s70
      %s88 = sphi 0, %s88
      %s90 = sphi 0, %s88
      %s91 = sphi 0, %s90
      %s105 = sphi 0, %s91
      %s109 = sphi 0, %s109
      %s111 = sphi 0, %s109
      %s112 = sphi 0, %s111
      %s126 = sphi 0, %s112
      %s130 = sphi 0, %s130
      %s132 = sphi 0, %s130
      %s133 = sphi 0, %s132
      %s147 = sphi 0, %s133
      %s153 = sphi 0, %s155
      %s156 = sphi 0, %s153
      %s157 = sphi 0, %s156
      %s173 = sphi 0, %s157
      %s179 = sphi 0, %s181
      %s182 = sphi 0, %s179
      %s183 = sphi 0, %s182
      %s199 = sphi 0, %s183
      %s207 = sphi 0, %s209
      %s210 = sphi 0, %s207
      %s211 = sphi 0, %s210
      %s227 = sphi 0, %s211
    $region4: #{tpu_custom_call.1} parent=1 // loop_header_branch
      %24 = sbr.rel (%p22) target = $region8
    $region5: #{tpu_custom_call.1} parent=1 // loop_body
      %s26 = ssub.s32 %s21, 1
      %s27 = ssub.s32 %s21, 2
      %s34 = sadd.s32 1, %s29
      %p35 = scmp.ge.s32.totalorder %s34, 1
      %s36 = scalar_select %p35, 0, %s34
      %s37 = sadd.s32 1, %s28
      %s38 = scalar_select %p35, %s37, %s28
      %p39 = scmp.ge.s32.totalorder %s38, 2
      %s40 = scalar_select %p39, 0, %s38
      %s41 = ssub.s32 %s28, %s40
      %p42 = scmp.eq.s32.totalorder %s41, 0
      %s44 = sadd.s32 %s43, 1
      %s45 = scalar_select %p42, %s43, %s44
      %p48 = pneg %p42
      %p49 = scmp.eq.s32.totalorder %s21, 1
      %p50 = por %p48, %p49
      %p51 = scmp.ne.s32.totalorder %s43, %s46
      %p52 = scmp.eq.s32.totalorder %s21, 0
      %p53 = por %p51, %p52
      %p54 = scmp.ne.s32.totalorder %s43, %s46
      %p55 = scmp.eq.s32.totalorder %s26, 1
      %p56 = por %p54, %p55
      %p57 = scmp.ne.s32.totalorder %s46, %s47
      %p58 = scmp.eq.s32.totalorder %s26, 0
      %p59 = por %p57, %p58
      %p60 = scmp.ne.s32.totalorder %s46, %s47
      %p61 = scmp.eq.s32.totalorder %s27, 1
      %p62 = por %p60, %p61
      %p64 = scmp.ne.s32.totalorder %s47, %s63
      %p65 = scmp.eq.s32.totalorder %s27, 0
      %p66 = por %p64, %p65
      %s68 = sadd.s32 %s67, 1
      %p71 = scmp.eq.s32.totalorder %s21, 1
      %p72 = scmp.ne.s32.totalorder %s67, %s69
      %p73 = scmp.eq.s32.totalorder %s21, 0
      %p74 = por %p72, %p73
      %p75 = scmp.ne.s32.totalorder %s67, %s69
      %p76 = scmp.eq.s32.totalorder %s26, 1
      %p77 = por %p75, %p76
      %p78 = scmp.ne.s32.totalorder %s69, %s70
      %p79 = scmp.eq.s32.totalorder %s26, 0
      %p80 = por %p78, %p79
      %p81 = scmp.ne.s32.totalorder %s69, %s70
      %p82 = scmp.eq.s32.totalorder %s27, 1
      %p83 = por %p81, %p82
      %p85 = scmp.ne.s32.totalorder %s70, %s84
      %p86 = scmp.eq.s32.totalorder %s27, 0
      %p87 = por %p85, %p86
      %s89 = sadd.s32 %s88, 1
      %p92 = scmp.eq.s32.totalorder %s21, 1
      %p93 = scmp.ne.s32.totalorder %s88, %s90
      %p94 = scmp.eq.s32.totalorder %s21, 0
      %p95 = por %p93, %p94
      %p96 = scmp.ne.s32.totalorder %s88, %s90
      %p97 = scmp.eq.s32.totalorder %s26, 1
      %p98 = por %p96, %p97
      %p99 = scmp.ne.s32.totalorder %s90, %s91
      %p100 = scmp.eq.s32.totalorder %s26, 0
      %p101 = por %p99, %p100
      %p102 = scmp.ne.s32.totalorder %s90, %s91
      %p103 = scmp.eq.s32.totalorder %s27, 1
      %p104 = por %p102, %p103
      %p106 = scmp.ne.s32.totalorder %s91, %s105
      %p107 = scmp.eq.s32.totalorder %s27, 0
      %p108 = por %p106, %p107
      %s110 = sadd.s32 %s109, 1
      %p113 = scmp.eq.s32.totalorder %s21, 1
      %p114 = scmp.ne.s32.totalorder %s109, %s111
      %p115 = scmp.eq.s32.totalorder %s21, 0
      %p116 = por %p114, %p115
      %p117 = scmp.ne.s32.totalorder %s109, %s111
      %p118 = scmp.eq.s32.totalorder %s26, 1
      %p119 = por %p117, %p118
      %p120 = scmp.ne.s32.totalorder %s111, %s112
      %p121 = scmp.eq.s32.totalorder %s26, 0
      %p122 = por %p120, %p121
      %p123 = scmp.ne.s32.totalorder %s111, %s112
      %p124 = scmp.eq.s32.totalorder %s27, 1
      %p125 = por %p123, %p124
      %p127 = scmp.ne.s32.totalorder %s112, %s126
      %p128 = scmp.eq.s32.totalorder %s27, 0
      %p129 = por %p127, %p128
      %s131 = sadd.s32 %s130, 1
      %p134 = scmp.eq.s32.totalorder %s21, 1
      %p135 = scmp.ne.s32.totalorder %s130, %s132
      %p136 = scmp.eq.s32.totalorder %s21, 0
      %p137 = por %p135, %p136
      %p138 = scmp.ne.s32.totalorder %s130, %s132
      %p139 = scmp.eq.s32.totalorder %s26, 1
      %p140 = por %p138, %p139
      %p141 = scmp.ne.s32.totalorder %s132, %s133
      %p142 = scmp.eq.s32.totalorder %s26, 0
      %p143 = por %p141, %p142
      %p144 = scmp.ne.s32.totalorder %s132, %s133
      %p145 = scmp.eq.s32.totalorder %s27, 1
      %p146 = por %p144, %p145
      %p148 = scmp.ne.s32.totalorder %s133, %s147
      %p149 = scmp.eq.s32.totalorder %s27, 0
      %p150 = por %p148, %p149
      %s151 = ssub.s32 %s29, %s36
      %p152 = scmp.eq.s32.totalorder %s151, 0
      %s154 = sadd.s32 %s153, 1
      %s155 = scalar_select %p152, %s153, %s154
      %p158 = pneg %p152
      %p159 = scmp.eq.s32.totalorder %s21, 1
      %p160 = por %p158, %p159
      %p161 = scmp.ne.s32.totalorder %s153, %s156
      %p162 = scmp.eq.s32.totalorder %s21, 0
      %p163 = por %p161, %p162
      %p164 = scmp.ne.s32.totalorder %s153, %s156
      %p165 = scmp.eq.s32.totalorder %s26, 1
      %p166 = por %p164, %p165
      %p167 = scmp.ne.s32.totalorder %s156, %s157
      %p168 = scmp.eq.s32.totalorder %s26, 0
      %p169 = por %p167, %p168
      %p170 = scmp.ne.s32.totalorder %s156, %s157
      %p171 = scmp.eq.s32.totalorder %s27, 1
      %p172 = por %p170, %p171
      %p174 = scmp.ne.s32.totalorder %s157, %s173
      %p175 = scmp.eq.s32.totalorder %s27, 0
      %p176 = por %p174, %p175
      %s177 = ssub.s32 %s29, %s36
      %p178 = scmp.eq.s32.totalorder %s177, 0
      %s180 = sadd.s32 %s179, 1
      %s181 = scalar_select %p178, %s179, %s180
      %p184 = pneg %p178
      %p185 = scmp.eq.s32.totalorder %s21, 1
      %p186 = por %p184, %p185
      %p187 = scmp.ne.s32.totalorder %s179, %s182
      %p188 = scmp.eq.s32.totalorder %s21, 0
      %p189 = por %p187, %p188
      %p190 = scmp.ne.s32.totalorder %s179, %s182
      %p191 = scmp.eq.s32.totalorder %s26, 1
      %p192 = por %p190, %p191
      %p193 = scmp.ne.s32.totalorder %s182, %s183
      %p194 = scmp.eq.s32.totalorder %s26, 0
      %p195 = por %p193, %p194
      %p196 = scmp.ne.s32.totalorder %s182, %s183
      %p197 = scmp.eq.s32.totalorder %s27, 1
      %p198 = por %p196, %p197
      %p200 = scmp.ne.s32.totalorder %s183, %s199
      %p201 = scmp.eq.s32.totalorder %s27, 0
      %p202 = por %p200, %p201
      %s203 = ssub.s32 %s28, %s40
      %s204 = ssub.s32 %s29, %s36
      %s205 = sor.u32 %s203, %s204
      %p206 = scmp.eq.s32.totalorder %s205, 0
      %s208 = sadd.s32 %s207, 1
      %s209 = scalar_select %p206, %s207, %s208
      %p212 = pneg %p206
      %p213 = scmp.eq.s32.totalorder %s21, 1
      %p214 = por %p212, %p213
      %p215 = scmp.ne.s32.totalorder %s207, %s210
      %p216 = scmp.eq.s32.totalorder %s21, 0
      %p217 = por %p215, %p216
      %p218 = scmp.ne.s32.totalorder %s207, %s210
      %p219 = scmp.eq.s32.totalorder %s26, 1
      %p220 = por %p218, %p219
      %p221 = scmp.ne.s32.totalorder %s210, %s211
      %p222 = scmp.eq.s32.totalorder %s26, 0
      %p223 = por %p221, %p222
      %p224 = scmp.ne.s32.totalorder %s210, %s211
      %p225 = scmp.eq.s32.totalorder %s27, 1
      %p226 = por %p224, %p225
      %p228 = scmp.ne.s32.totalorder %s211, %s227
      %p229 = scmp.eq.s32.totalorder %s27, 0
      %p230 = por %p228, %p229
      %p231 = scmp.le.s32.totalorder 1, %s21
      %p232 = scmp.lt.s32.totalorder %s21, 3
      %p233 = pnand %p231, %p232
      %p234 = pneg %p233
      // Predicated region
      $region9: #{tpu_custom_call.1} parent=5 // pred_check
        _
      $region10: #{tpu_custom_call.1} parent=5 // pred_check_branch
        %236 = sbr.rel (%p233) target = $region12
      $region11: #{tpu_custom_call.1} parent=5 // pred_region
        %s237 = ssub.s32 %s21, 1
        // Predicated region
        $region13: #{tpu_custom_call.1} parent=11 // pred_check
          %p238 = pneg %p80
        $region14: #{tpu_custom_call.1} parent=11 // pred_check_branch
          %240 = sbr.rel (%p238) target = $region16
        $region15: #{tpu_custom_call.1} parent=11 // pred_region
          %s242 = ssub.s32 1024, 1024
          %243 = vsyncadd [#allocation7], %s242
          %s244 = sshll.u32 [#allocation6], 4
          %s245 = int_to_ptr.vmem [resolvable:$true] %s244
          %250 = dma.hbm_to_vmem [thread:$0]  %s1, 1024, %s245, [#allocation7], 64, 64, 4
        $region16: #{tpu_custom_call.1} parent=11 // pred_fallthru
          _
        // Predicated region
        $region17: #{tpu_custom_call.1} parent=11 // pred_check
          %p251 = pneg %p101
        $region18: #{tpu_custom_call.1} parent=11 // pred_check_branch
          %253 = sbr.rel (%p251) target = $region20
        $region19: #{tpu_custom_call.1} parent=11 // pred_region
          _
        $region20: #{tpu_custom_call.1} parent=11 // pred_fallthru
          _
        // Predicated region
        $region21: #{tpu_custom_call.1} parent=11 // pred_check
          %p254 = pneg %p122
        $region22: #{tpu_custom_call.1} parent=11 // pred_check_branch
          %256 = sbr.rel (%p254) target = $region24
        $region23: #{tpu_custom_call.1} parent=11 // pred_region
          %s258 = ssub.s32 1024, 1024
          %259 = vsyncadd [#allocation7], %s258
          %s260 = sshll.u32 [#allocation8], 4
          %s261 = int_to_ptr.vmem [resolvable:$true] %s260
          %266 = dma.hbm_to_vmem [thread:$0]  %s3, 1024, %s261, [#allocation7], 64, 64, 4
        $region24: #{tpu_custom_call.1} parent=11 // pred_fallthru
          _
        // Predicated region
        $region25: #{tpu_custom_call.1} parent=11 // pred_check
          %p267 = pneg %p143
        $region26: #{tpu_custom_call.1} parent=11 // pred_check_branch
          %269 = sbr.rel (%p267) target = $region28
        $region27: #{tpu_custom_call.1} parent=11 // pred_region
          _
        $region28: #{tpu_custom_call.1} parent=11 // pred_fallthru
          _
        // Predicated region
        $region29: #{tpu_custom_call.1} parent=11 // pred_check
          %p270 = pneg %p169
        $region30: #{tpu_custom_call.1} parent=11 // pred_check_branch
          %272 = sbr.rel (%p270) target = $region32
        $region31: #{tpu_custom_call.1} parent=11 // pred_region
          %s274 = ssub.s32 1024, 1024
          %275 = vsyncadd [#allocation10], %s274
          %s276 = smul.addr %s31, 64
          %s277 = scalar_lea.hbm %s5, %s276
          %s278 = sshll.u32 [#allocation9], 4
          %s279 = int_to_ptr.vmem [resolvable:$true] %s278
          %284 = dma.hbm_to_vmem [thread:$0]  %s277, 1024, %s279, [#allocation10], 64, 64, 4
        $region32: #{tpu_custom_call.1} parent=11 // pred_fallthru
          _
        // Predicated region
        $region33: #{tpu_custom_call.1} parent=11 // pred_check
          %p285 = pneg %p195
        $region34: #{tpu_custom_call.1} parent=11 // pred_check_branch
          %287 = sbr.rel (%p285) target = $region36
        $region35: #{tpu_custom_call.1} parent=11 // pred_region
          %p288 = scmp.lt.s32.totalorder %s31, 0
          %s289 = scalar_select %p288, %s31, 0
          %s290 = scalar_lea.vmem %s6, %s289
        $region36: #{tpu_custom_call.1} parent=11 // pred_fallthru
          _
      $region12: #{tpu_custom_call.1} parent=5 // pred_fallthru
        _
      %p291 = scmp.lt.s32.totalorder %s21, 2
      // Predicated region
      $region37: #{tpu_custom_call.1} parent=5 // pred_check
        %p292 = pneg %p291
      $region38: #{tpu_custom_call.1} parent=5 // pred_check_branch
        %294 = sbr.rel (%p292) target = $region40
      $region39: #{tpu_custom_call.1} parent=5 // pred_region
        // Predicated region
        $region41: #{tpu_custom_call.1} parent=39 // pred_check
          %p295 = pneg %p53
        $region42: #{tpu_custom_call.1} parent=39 // pred_check_branch
          %297 = sbr.rel (%p295) target = $region44
        $region43: #{tpu_custom_call.1} parent=39 // pred_region
          %s298 = sand.u32 %s43, 1
          %s299 = scalar_lea.sflag [#allocation4], %s298
          %s300 = sand.u32 %s43, 1
          %s301 = smul.addr %s300, 4
          %s302 = scalar_lea.vmem [#allocation3], %s301
          %s304 = ssub.s32 64, 64
          %305 = vsyncadd %s299, %s304
          %s306 = smul.addr %s28, 64
          %s307 = scalar_lea.hbm %s0, %s306
          %s309 = sshll.u32 %s302, 4
          %s310 = int_to_ptr.vmem [resolvable:$true] %s309
          %312 = dma.hbm_to_vmem [thread:$0]  %s307, 64, %s310, %s299
        $region44: #{tpu_custom_call.1} parent=39 // pred_fallthru
          _
      $region40: #{tpu_custom_call.1} parent=5 // pred_fallthru
        _
      %p313 = scmp.le.s32.totalorder 1, %s21
      %p314 = scmp.lt.s32.totalorder %s21, 3
      %p315 = pnand %p313, %p314
      %p316 = pneg %p315
      // Predicated region
      $region45: #{tpu_custom_call.1} parent=5 // pred_check
        _
      $region46: #{tpu_custom_call.1} parent=5 // pred_check_branch
        %318 = sbr.rel (%p315) target = $region48
      $region47: #{tpu_custom_call.1} parent=5 // pred_region
        %s319 = ssub.s32 %s21, 1
        %s320 = sand.u32 %s46, 1
        %s321 = scalar_lea.sflag [#allocation4], %s320
        %s322 = sand.u32 %s46, 1
        %s323 = smul.addr %s322, 4
        %s324 = scalar_lea.vmem [#allocation3], %s323
        // Predicated region
        $region49: #{tpu_custom_call.1} parent=47 // pred_check
          %p325 = pneg %p59
        $region50: #{tpu_custom_call.1} parent=47 // pred_check_branch
          %327 = sbr.rel (%p325) target = $region52
        $region51: #{tpu_custom_call.1} parent=47 // pred_region
          %328 = dma.done %s321, 64
        $region52: #{tpu_custom_call.1} parent=47 // pred_fallthru
          _
        // Predicated region
        $region53: #{tpu_custom_call.1} parent=47 // pred_check
          %p329 = pneg %p80
        $region54: #{tpu_custom_call.1} parent=47 // pred_check_branch
          %331 = sbr.rel (%p329) target = $region56
        $region55: #{tpu_custom_call.1} parent=47 // pred_region
          %332 = dma.done [#allocation7], 1024
        $region56: #{tpu_custom_call.1} parent=47 // pred_fallthru
          _
        // Predicated region
        $region57: #{tpu_custom_call.1} parent=47 // pred_check
          %p333 = pneg %p122
        $region58: #{tpu_custom_call.1} parent=47 // pred_check_branch
          %335 = sbr.rel (%p333) target = $region60
        $region59: #{tpu_custom_call.1} parent=47 // pred_region
          %336 = dma.done [#allocation7], 1024
        $region60: #{tpu_custom_call.1} parent=47 // pred_fallthru
          _
        // Predicated region
        $region61: #{tpu_custom_call.1} parent=47 // pred_check
          %p337 = pneg %p169
        $region62: #{tpu_custom_call.1} parent=47 // pred_check_branch
          %339 = sbr.rel (%p337) target = $region64
        $region63: #{tpu_custom_call.1} parent=47 // pred_region
          %340 = dma.done [#allocation10], 1024
        $region64: #{tpu_custom_call.1} parent=47 // pred_fallthru
          _
        %s341 = sand.u32 %s46, 1
        %s342 = scalar_lea.sflag [#allocation4], %s341
        %s343 = sand.u32 %s46, 1
        %s344 = smul.addr %s343, 4
        %s345 = scalar_lea.vmem [#allocation3], %s344
        %p346 = pneg %p59
        %p347 = pneg %p56
        %p348 = pneg %p80
        %p349 = pneg %p77
        %p350 = pneg %p101
        %p351 = pneg %p98
        %p352 = pneg %p122
        %p353 = pneg %p119
        %p354 = pneg %p143
        %p355 = pneg %p140
        %p356 = pneg %p169
        %p357 = pneg %p166
        %p358 = scmp.lt.s32.totalorder %s31, 0
        %s359 = scalar_select %p358, %s31, 0
        %s360 = scalar_lea.vmem %s6, %s359
        %p361 = pneg %p195
        %p362 = pneg %p192
        %p363 = pneg %p223
        %p364 = pneg %p220
        %s365 = sand.u32 %s210, 1
        %s366 = scalar_lea.sflag [#allocation5], %s365
        %s367 = sand.u32 %s210, 1
        %s368 = smul.addr %s367, 4
        %s369 = scalar_lea.vmem [#allocation11], %s368
        %p370 = scmp.lt.s32.totalorder %s31, 0
        %s371 = scalar_select %p370, %s31, 0
        %s372 = scalar_lea.vmem %s6, %s371
        %p374 = scmp.eq.s32.totalorder %s31, 0
        // Predicated region
        $region65: #{tpu_custom_call.1} parent=47 // pred_check
          %p375 = pneg %p374
        $region66: #{tpu_custom_call.1} parent=47 // pred_check_branch
          %377 = sbr.rel (%p375) target = $region68
        $region67: #{tpu_custom_call.1} parent=47 // pred_region
          %v378 = vld [vmem:[%s324] sm:$0xf]
          %v379 = vld [vmem:[#allocation6] sm:$0xf]
          %v380 = vld [vmem:[#allocation6 + $0x4] sm:$0xf]
          %v381 = vld [vmem:[#allocation6 + $0x8] sm:$0xf]
          %v382 = vld [vmem:[#allocation6 + $0xc] sm:$0xf]
          %v383 = vld [vmem:[#allocation6 + $0x10] sm:$0xf]
          %v384 = vld [vmem:[#allocation6 + $0x14] sm:$0xf]
          %v385 = vld [vmem:[#allocation6 + $0x18] sm:$0xf]
          %v386 = vld [vmem:[#allocation6 + $0x1c] sm:$0xf]
          %v387 = vld [vmem:[#allocation6 + $0x20] sm:$0xf]
          %v388 = vld [vmem:[#allocation6 + $0x24] sm:$0xf]
          %v389 = vld [vmem:[#allocation6 + $0x28] sm:$0xf]
          %v390 = vld [vmem:[#allocation6 + $0x2c] sm:$0xf]
          %v391 = vld [vmem:[#allocation6 + $0x30] sm:$0xf]
          %v392 = vld [vmem:[#allocation6 + $0x34] sm:$0xf]
          %v393 = vld [vmem:[#allocation6 + $0x38] sm:$0xf]
          %v394 = vld [vmem:[#allocation6 + $0x3c] sm:$0xf]
          %v395 = vld [vmem:[%s2] sm:$0x1]
          %v397 = vlaneseq
          %v398 = vshrl.u32 %v397, 7
          %v399 = vsub.s32 0, %v398
          %v400 = vrot.slane %v395, %v399
          %v418 = vunpack.c.l.b16 %v379
          %v419 = vunpack.c.l.b16 %v380
          %v420 = vunpack.c.l.b16 %v381
          %v421 = vunpack.c.l.b16 %v382
          %v422 = vunpack.c.l.b16 %v383
          %v423 = vunpack.c.l.b16 %v384
          %v424 = vunpack.c.l.b16 %v385
          %v425 = vunpack.c.l.b16 %v386
          %v426 = vunpack.c.l.b16 %v387
          %v427 = vunpack.c.l.b16 %v388
          %v428 = vunpack.c.l.b16 %v389
          %v429 = vunpack.c.l.b16 %v390
          %v430 = vunpack.c.l.b16 %v391
          %v431 = vunpack.c.l.b16 %v392
          %v432 = vunpack.c.l.b16 %v393
          %v433 = vunpack.c.l.b16 %v394
          %v434 = vpack.c.b16 %v419, %v418
          %v435 = vpack.c.b16 %v421, %v420
          %v436 = vpack.c.b16 %v423, %v422
          %v437 = vpack.c.b16 %v425, %v424
          %v438 = vpack.c.b16 %v427, %v426
          %v439 = vpack.c.b16 %v429, %v428
          %v440 = vpack.c.b16 %v431, %v430
          %v441 = vpack.c.b16 %v433, %v432
          %450 = vmatprep.subr.bf16.mxu0 0
          %451 = vmatpush1.bf16.msra.mxu0 %v441
          %452 = vmatprep.subr.bf16.mxu0 0
          %453 = vmatpush1.bf16.msra.mxu0 %v440
          %454 = vmatprep.subr.bf16.mxu0 0
          %455 = vmatpush1.bf16.msra.mxu0 %v439
          %456 = vmatprep.subr.bf16.mxu0 0
          %457 = vmatpush1.bf16.msra.mxu0 %v438
          %458 = vmatprep.subr.bf16.mxu0 0
          %459 = vmatpush1.bf16.msra.mxu0 %v437
          %460 = vmatprep.subr.bf16.mxu0 0
          %461 = vmatpush1.bf16.msra.mxu0 %v436
          %462 = vmatprep.subr.bf16.mxu0 0
          %463 = vmatpush1.bf16.msra.mxu0 %v435
          %464 = vmatprep.subr.bf16.mxu0 0
          %465 = vmatpush1.bf16.msra.mxu0 %v434
          %466 = vmatprep.subr.bf16.mxu0 0
          %467 = vmatpush2.bf16.msra.mxu0 0
          %468 = vmatprep.subr.bf16.mxu0 0
          %469 = vmatpush2.bf16.msra.mxu0 0
          %470 = vmatprep.subr.bf16.mxu0 0
          %471 = vmatpush2.bf16.msra.mxu0 0
          %472 = vmatprep.subr.bf16.mxu0 0
          %473 = vmatpush2.bf16.msra.mxu0 0
          %474 = vmatprep.subr.bf16.mxu0 0
          %475 = vmatpush2.bf16.msra.mxu0 0
          %476 = vmatprep.subr.bf16.mxu0 0
          %477 = vmatpush2.bf16.msra.mxu0 0
          %478 = vmatprep.subr.bf16.mxu0 0
          %479 = vmatpush2.bf16.msra.mxu0 0
          %480 = vmatprep.subr.bf16.mxu0 0
          %481 = vmatpush2.bf16.msra.mxu0 0
          %482 = vmatprep.mubr.bf16.mxu0 0
          %483 = vmatmul.mubr.bf16.gmra.mxu0 %v378
          %v484 = vpop.f32.mrf.mxu0
          %v485 = vadd.f32 %v400, %v484
          %v486 = vpop.f32.mrf.mxu0
          %v487 = vpop.f32.mrf.mxu0
          %v488 = vpop.f32.mrf.mxu0
          %489 = vdwg.mxu0
          %v490 = vmul.f32 %v485, 0.01
          %v491 = vmax.f32 %v485, %v490
          %v492 = vpack.c.bf16 %v491, %v491
          %v493 = vld [vmem:[#allocation8] sm:$0xf]
          %v494 = vld [vmem:[#allocation8 + $0x4] sm:$0xf]
          %v495 = vld [vmem:[#allocation8 + $0x8] sm:$0xf]
          %v496 = vld [vmem:[#allocation8 + $0xc] sm:$0xf]
          %v497 = vld [vmem:[#allocation8 + $0x10] sm:$0xf]
          %v498 = vld [vmem:[#allocation8 + $0x14] sm:$0xf]
          %v499 = vld [vmem:[#allocation8 + $0x18] sm:$0xf]
          %v500 = vld [vmem:[#allocation8 + $0x1c] sm:$0xf]
          %v501 = vld [vmem:[#allocation8 + $0x20] sm:$0xf]
          %v502 = vld [vmem:[#allocation8 + $0x24] sm:$0xf]
          %v503 = vld [vmem:[#allocation8 + $0x28] sm:$0xf]
          %v504 = vld [vmem:[#allocation8 + $0x2c] sm:$0xf]
          %v505 = vld [vmem:[#allocation8 + $0x30] sm:$0xf]
          %v506 = vld [vmem:[#allocation8 + $0x34] sm:$0xf]
          %v507 = vld [vmem:[#allocation8 + $0x38] sm:$0xf]
          %v508 = vld [vmem:[#allocation8 + $0x3c] sm:$0xf]
          %v509 = vld [vmem:[%s4] sm:$0x1]
          %v511 = vlaneseq
          %v512 = vshrl.u32 %v511, 7
          %v513 = vsub.s32 0, %v512
          %v514 = vrot.slane %v509, %v513
          %v532 = vunpack.c.l.b16 %v493
          %v533 = vunpack.c.l.b16 %v494
          %v534 = vunpack.c.l.b16 %v495
          %v535 = vunpack.c.l.b16 %v496
          %v536 = vunpack.c.l.b16 %v497
          %v537 = vunpack.c.l.b16 %v498
          %v538 = vunpack.c.l.b16 %v499
          %v539 = vunpack.c.l.b16 %v500
          %v540 = vunpack.c.l.b16 %v501
          %v541 = vunpack.c.l.b16 %v502
          %v542 = vunpack.c.l.b16 %v503
          %v543 = vunpack.c.l.b16 %v504
          %v544 = vunpack.c.l.b16 %v505
          %v545 = vunpack.c.l.b16 %v506
          %v546 = vunpack.c.l.b16 %v507
          %v547 = vunpack.c.l.b16 %v508
          %v548 = vpack.c.b16 %v533, %v532
          %v549 = vpack.c.b16 %v535, %v534
          %v550 = vpack.c.b16 %v537, %v536
          %v551 = vpack.c.b16 %v539, %v538
          %v552 = vpack.c.b16 %v541, %v540
          %v553 = vpack.c.b16 %v543, %v542
          %v554 = vpack.c.b16 %v545, %v544
          %v555 = vpack.c.b16 %v547, %v546
          %564 = vmatprep.subr.bf16.mxu0 0
          %565 = vmatpush1.bf16.msra.mxu0 %v555
          %566 = vmatprep.subr.bf16.mxu0 0
          %567 = vmatpush1.bf16.msra.mxu0 %v554
          %568 = vmatprep.subr.bf16.mxu0 0
          %569 = vmatpush1.bf16.msra.mxu0 %v553
          %570 = vmatprep.subr.bf16.mxu0 0
          %571 = vmatpush1.bf16.msra.mxu0 %v552
          %572 = vmatprep.subr.bf16.mxu0 0
          %573 = vmatpush1.bf16.msra.mxu0 %v551
          %574 = vmatprep.subr.bf16.mxu0 0
          %575 = vmatpush1.bf16.msra.mxu0 %v550
          %576 = vmatprep.subr.bf16.mxu0 0
          %577 = vmatpush1.bf16.msra.mxu0 %v549
          %578 = vmatprep.subr.bf16.mxu0 0
          %579 = vmatpush1.bf16.msra.mxu0 %v548
          %580 = vmatprep.subr.bf16.mxu0 0
          %581 = vmatpush2.bf16.msra.mxu0 0
          %582 = vmatprep.subr.bf16.mxu0 0
          %583 = vmatpush2.bf16.msra.mxu0 0
          %584 = vmatprep.subr.bf16.mxu0 0
          %585 = vmatpush2.bf16.msra.mxu0 0
          %586 = vmatprep.subr.bf16.mxu0 0
          %587 = vmatpush2.bf16.msra.mxu0 0
          %588 = vmatprep.subr.bf16.mxu0 0
          %589 = vmatpush2.bf16.msra.mxu0 0
          %590 = vmatprep.subr.bf16.mxu0 0
          %591 = vmatpush2.bf16.msra.mxu0 0
          %592 = vmatprep.subr.bf16.mxu0 0
          %593 = vmatpush2.bf16.msra.mxu0 0
          %594 = vmatprep.subr.bf16.mxu0 0
          %595 = vmatpush2.bf16.msra.mxu0 0
          %596 = vmatprep.mubr.bf16.mxu0 0
          %597 = vmatmul.mubr.bf16.gmra.mxu0 %v492
          %v598 = vpop.f32.mrf.mxu0
          %v599 = vadd.f32 %v514, %v598
          %v600 = vpop.f32.mrf.mxu0
          %v601 = vpop.f32.mrf.mxu0
          %v602 = vpop.f32.mrf.mxu0
          %603 = vdwg.mxu0
          %v604 = vmul.f32 %v599, 0.01
          %v605 = vmax.f32 %v599, %v604
          %v606 = vpack.c.bf16 %v605, %v605
          %607 = vst [vmem:[#allocation2] sm:$0xf] %v606
        $region68: #{tpu_custom_call.1} parent=47 // pred_fallthru
          _
        %v608 = vld [vmem:[#allocation2] sm:$0xf]
        %v609 = vld [vmem:[#allocation9] sm:$0xf]
        %v610 = vld [vmem:[#allocation9 + $0x4] sm:$0xf]
        %v611 = vld [vmem:[#allocation9 + $0x8] sm:$0xf]
        %v612 = vld [vmem:[#allocation9 + $0xc] sm:$0xf]
        %v613 = vld [vmem:[#allocation9 + $0x10] sm:$0xf]
        %v614 = vld [vmem:[#allocation9 + $0x14] sm:$0xf]
        %v615 = vld [vmem:[#allocation9 + $0x18] sm:$0xf]
        %v616 = vld [vmem:[#allocation9 + $0x1c] sm:$0xf]
        %v617 = vld [vmem:[#allocation9 + $0x20] sm:$0xf]
        %v618 = vld [vmem:[#allocation9 + $0x24] sm:$0xf]
        %v619 = vld [vmem:[#allocation9 + $0x28] sm:$0xf]
        %v620 = vld [vmem:[#allocation9 + $0x2c] sm:$0xf]
        %v621 = vld [vmem:[#allocation9 + $0x30] sm:$0xf]
        %v622 = vld [vmem:[#allocation9 + $0x34] sm:$0xf]
        %v623 = vld [vmem:[#allocation9 + $0x38] sm:$0xf]
        %v624 = vld [vmem:[#allocation9 + $0x3c] sm:$0xf]
        %v625 = vld [vmem:[%s372] sm:$0x1]
        %v627 = vlaneseq
        %v628 = vshrl.u32 %v627, 7
        %v629 = vsub.s32 0, %v628
        %v630 = vrot.slane %v625, %v629
        %v648 = vunpack.c.l.b16 %v609
        %v649 = vunpack.c.l.b16 %v610
        %v650 = vunpack.c.l.b16 %v611
        %v651 = vunpack.c.l.b16 %v612
        %v652 = vunpack.c.l.b16 %v613
        %v653 = vunpack.c.l.b16 %v614
        %v654 = vunpack.c.l.b16 %v615
        %v655 = vunpack.c.l.b16 %v616
        %v656 = vunpack.c.l.b16 %v617
        %v657 = vunpack.c.l.b16 %v618
        %v658 = vunpack.c.l.b16 %v619
        %v659 = vunpack.c.l.b16 %v620
        %v660 = vunpack.c.l.b16 %v621
        %v661 = vunpack.c.l.b16 %v622
        %v662 = vunpack.c.l.b16 %v623
        %v663 = vunpack.c.l.b16 %v624
        %v664 = vpack.c.b16 %v649, %v648
        %v665 = vpack.c.b16 %v651, %v650
        %v666 = vpack.c.b16 %v653, %v652
        %v667 = vpack.c.b16 %v655, %v654
        %v668 = vpack.c.b16 %v657, %v656
        %v669 = vpack.c.b16 %v659, %v658
        %v670 = vpack.c.b16 %v661, %v660
        %v671 = vpack.c.b16 %v663, %v662
        %680 = vmatprep.subr.bf16.mxu0 0
        %681 = vmatpush1.bf16.msra.mxu0 %v671
        %682 = vmatprep.subr.bf16.mxu0 0
        %683 = vmatpush1.bf16.msra.mxu0 %v670
        %684 = vmatprep.subr.bf16.mxu0 0
        %685 = vmatpush1.bf16.msra.mxu0 %v669
        %686 = vmatprep.subr.bf16.mxu0 0
        %687 = vmatpush1.bf16.msra.mxu0 %v668
        %688 = vmatprep.subr.bf16.mxu0 0
        %689 = vmatpush1.bf16.msra.mxu0 %v667
        %690 = vmatprep.subr.bf16.mxu0 0
        %691 = vmatpush1.bf16.msra.mxu0 %v666
        %692 = vmatprep.subr.bf16.mxu0 0
        %693 = vmatpush1.bf16.msra.mxu0 %v665
        %694 = vmatprep.subr.bf16.mxu0 0
        %695 = vmatpush1.bf16.msra.mxu0 %v664
        %696 = vmatprep.subr.bf16.mxu0 0
        %697 = vmatpush2.bf16.msra.mxu0 0
        %698 = vmatprep.subr.bf16.mxu0 0
        %699 = vmatpush2.bf16.msra.mxu0 0
        %700 = vmatprep.subr.bf16.mxu0 0
        %701 = vmatpush2.bf16.msra.mxu0 0
        %702 = vmatprep.subr.bf16.mxu0 0
        %703 = vmatpush2.bf16.msra.mxu0 0
        %704 = vmatprep.subr.bf16.mxu0 0
        %705 = vmatpush2.bf16.msra.mxu0 0
        %706 = vmatprep.subr.bf16.mxu0 0
        %707 = vmatpush2.bf16.msra.mxu0 0
        %708 = vmatprep.subr.bf16.mxu0 0
        %709 = vmatpush2.bf16.msra.mxu0 0
        %710 = vmatprep.subr.bf16.mxu0 0
        %711 = vmatpush2.bf16.msra.mxu0 0
        %712 = vmatprep.mubr.bf16.mxu0 0
        %713 = vmatmul.mubr.bf16.gmra.mxu0 %v608
        %v714 = vpop.f32.mrf.mxu0
        %v715 = vadd.f32 %v630, %v714
        %v716 = vpop.f32.mrf.mxu0
        %v717 = vpop.f32.mrf.mxu0
        %v718 = vpop.f32.mrf.mxu0
        %719 = vdwg.mxu0
        %v720 = vpack.c.bf16 %v715, %v715
        %721 = vst [vmem:[%s369] sm:$0xf] %v720
        %s722 = sand.u32 %s210, 1
        %s723 = scalar_lea.sflag [#allocation5], %s722
        %s724 = sand.u32 %s210, 1
        %s725 = smul.addr %s724, 4
        %s726 = scalar_lea.vmem [#allocation11], %s725
        // Predicated region
        $region69: #{tpu_custom_call.1} parent=47 // pred_check
          %p727 = pneg %p220
        $region70: #{tpu_custom_call.1} parent=47 // pred_check_branch
          %729 = sbr.rel (%p727) target = $region72
        $region71: #{tpu_custom_call.1} parent=47 // pred_region
          %s731 = ssub.s32 64, 64
          %732 = vsyncadd %s723, %s731
          %s733 = sadd.s32 %s31, %s30
          %s734 = smul.addr %s733, 64
          %s735 = scalar_lea.hbm %s7, %s734
          %s737 = sshll.u32 %s726, 4
          %s738 = int_to_ptr.vmem [resolvable:$true] %s737
          %740 = dma.vmem_to_hbm [thread:$0]  %s738, 64, %s735, %s723
        $region72: #{tpu_custom_call.1} parent=47 // pred_fallthru
          _
      $region48: #{tpu_custom_call.1} parent=5 // pred_fallthru
        _
      %p741 = scmp.le.s32.totalorder 2, %s21
      // Predicated region
      $region73: #{tpu_custom_call.1} parent=5 // pred_check
        %p742 = pneg %p741
      $region74: #{tpu_custom_call.1} parent=5 // pred_check_branch
        %744 = sbr.rel (%p742) target = $region76
      $region75: #{tpu_custom_call.1} parent=5 // pred_region
        %s745 = ssub.s32 %s21, 2
        // Predicated region
        $region77: #{tpu_custom_call.1} parent=75 // pred_check
          %p746 = pneg %p226
        $region78: #{tpu_custom_call.1} parent=75 // pred_check_branch
          %748 = sbr.rel (%p746) target = $region80
        $region79: #{tpu_custom_call.1} parent=75 // pred_region
          %s749 = sand.u32 %s211, 1
          %s750 = scalar_lea.sflag [#allocation5], %s749
          %s751 = sand.u32 %s211, 1
          %s752 = smul.addr %s751, 4
          %s753 = scalar_lea.vmem [#allocation11], %s752
          %754 = dma.done %s750, 64
        $region80: #{tpu_custom_call.1} parent=75 // pred_fallthru
          _
      $region76: #{tpu_custom_call.1} parent=5 // pred_fallthru
        _
    $region6: #{tpu_custom_call.1} parent=1 // loop_footer
      %s25 = sadd.s32 1, %s21
    $region7: #{tpu_custom_call.1} parent=1 // loop_footer_branch
      %20 = sbr.rel target = $region3
    $region8: #{tpu_custom_call.1} parent=1 // loop_exit
      _
    %755 = vsyncpa [#allocation4], 1
    %s756 = scalar_lea.sflag [#allocation4], 1
    %757 = vsyncpa %s756, 1
    %758 = vsyncpa [#allocation7], 1
    %759 = vsyncpa [#allocation10], 1
    %760 = vsyncpa [#allocation5], 1
    %s761 = scalar_lea.sflag [#allocation5], 1
    %762 = vsyncpa %s761, 1

</llo_original>
